<compile_context>
chip_gen: v7x
topology: tpu7x:2x2x1
jax: 0.10.0
libtpu: 0.0.40
codegen_flags: <defaults>
</compile_context>

<pallas_src>
import functools

import jax
import jax.numpy as jnp
from jax.experimental import pallas as pl
from jax.experimental.pallas import tpu as pltpu


def bottleneck_kernel(x_ref, w1_ref, b1_ref, w2_ref, b2_ref,
                      w3_ref, b3_ref, fc1_ref, fc2_ref, out_ref, *, K, pad):
    """One batch element per grid step.  x_ref: (Cin, L), NCL orientation."""
    x = x_ref[...]                                          # (Cin, L) f32
    L = x.shape[1]
    P = w1_ref.shape[0]

    # ---- conv1 (1x1, BN1 folded into weights) + relu ----
    h = jnp.dot(w1_ref[...], x, preferred_element_type=jnp.float32)    # (P, L)
    h = jnp.maximum(h + b1_ref[...], 0.0)

    # ---- conv2 (K taps, 'same' padding, stride=1) as a single matmul ----
    # Stack K lane-rolled copies of h along the channel (sublane) axis and
    # contract against w2 reshaped to (P, K*P).  Rolls use the XLU slot.
    lane = jax.lax.broadcasted_iota(jnp.int32, (P, L), 1)
    parts = []
    for t in range(K):                                      # K is small & static
        s = pad - t                                         # static shift
        v = h if s == 0 else pltpu.roll(h, shift=s % L, axis=1)
        if s > 0:                                           # mask left boundary
            v = jnp.where(lane >= s, v, 0.0)
        elif s < 0:                                         # mask right boundary
            v = jnp.where(lane < L + s, v, 0.0)
        parts.append(v)
    stacked = jnp.concatenate(parts, axis=0)                # (K*P, L)
    h = jnp.dot(w2_ref[...], stacked, preferred_element_type=jnp.float32)  # (P, L)
    h = jnp.maximum(h + b2_ref[...], 0.0)

    # ---- dropout(0.2): identity in eval mode ----

    # ---- conv3 (1x1, BN3 folded) ----
    h = jnp.dot(w3_ref[...], h, preferred_element_type=jnp.float32)    # (C4, L)
    h = h + b3_ref[...]

    # ---- SE layer: global avg pool over L -> fc -> relu -> fc -> sigmoid ----
    # Tiny FCs: VPU multiply + XLU reduce (no 1-row MXU matmuls).
    y = jnp.mean(h, axis=1, keepdims=True)                              # (C4, 1)
    z = jnp.sum(fc1_ref[...] * y, axis=0, keepdims=True)                # (1, Cr)
    z = jnp.maximum(z, 0.0)
    gate = jax.nn.sigmoid(
        jnp.sum(fc2_ref[...] * z, axis=1, keepdims=True))               # (C4, 1)
    h = h * gate

    # ---- residual add (downsample=None -> identity) + relu ----
    out_ref[...] = jnp.maximum(h + x, 0.0).astype(out_ref.dtype)        # lane-dense


def _full_spec(arr):
    nd = arr.ndim
    return pl.BlockSpec(arr.shape, lambda b, _nd=nd: (0,) * _nd)


def _prepare_kernel_params(params, eps=1e-5):
    """Fold BN running stats into conv weights; reshape for NCL matmuls."""
    def fold(gamma, beta, mean, var):
        scale = gamma / jnp.sqrt(var + eps)
        bias = beta - mean * scale
        return scale, bias

    s1, c1 = fold(*params["bn1"])
    s2, c2 = fold(*params["bn2"])
    s3, c3 = fold(*params["bn3"])

    P = params["w1"].shape[0]
    K = params["w2"].shape[2]

    w1 = params["w1"][:, :, 0] * s1[:, None]                    # (P, Cin)
    # w2r[q, t*P + p] = s2[q] * w2[q, p, t]
    w2 = jnp.transpose(params["w2"] * s2[:, None, None], (0, 2, 1)).reshape(P, K * P)
    w3 = params["w3"][:, :, 0] * s3[:, None]                    # (C4, P)

    return dict(
        w1=w1, b1=c1.reshape(-1, 1),
        w2=w2, b2=c2.reshape(-1, 1),
        w3=w3, b3=c3.reshape(-1, 1),
        fc1=params["fc1"].T,                                    # (C4, Cr)
        fc2=params["fc2"],                                      # (C4, Cr)
    )


def bottleneck_forward(x_ncl, params):
    """x_ncl: (B, Cin, L) float32 (PyTorch NCL layout).  Returns (B, C4, L)."""
    kp = _prepare_kernel_params(params)
    B, Cin, L = x_ncl.shape
    C4 = kp["w3"].shape[0]
    K = params["w2"].shape[2]
    pad = (K - 1) // 2
    assert Cin == C4, "identity residual requires inplanes == planes * expansion"

    weights = [kp[k] for k in ("w1", "b1", "w2", "b2", "w3", "b3", "fc1", "fc2")]

    return pl.pallas_call(
        functools.partial(bottleneck_kernel, K=K, pad=pad),
        out_shape=jax.ShapeDtypeStruct((B, C4, L), jnp.float32),
        grid_spec=pltpu.PrefetchScalarGridSpec(
            num_scalar_prefetch=0,
            grid=(B,),
            in_specs=[pl.BlockSpec((None, Cin, L), lambda b: (b, 0, 0))] +
                     [_full_spec(w) for w in weights],
            out_specs=pl.BlockSpec((None, C4, L), lambda b: (b, 0, 0)),
        ),
        compiler_params=pltpu.CompilerParams(
            dimension_semantics=("parallel",)),
    )(x_ncl, *weights)


def make_params(key, inplanes, planes, kernel_size, expansion=4, reduction=16):
    """Synthetic parameters in PyTorch-equivalent layouts."""
    c4 = planes * expansion
    cr = max(c4 // reduction, 1)
    keys = jax.random.split(key, 16)

    def nrm(k, shape, scale=0.1):
        return scale * jax.random.normal(k, shape, jnp.float32)

    def bn(kg, kb, km, kv, c):
        gamma = 1.0 + 0.1 * jax.random.normal(kg, (c,), jnp.float32)
        beta = 0.1 * jax.random.normal(kb, (c,), jnp.float32)
        mean = 0.1 * jax.random.normal(km, (c,), jnp.float32)
        var = 0.5 + jax.random.uniform(kv, (c,), jnp.float32)
        return (gamma, beta, mean, var)

    return dict(
        w1=nrm(keys[0], (planes, inplanes, 1)),                 # conv1 (out,in,1)
        w2=nrm(keys[1], (planes, planes, kernel_size)),         # conv2 (out,in,K)
        w3=nrm(keys[2], (c4, planes, 1)),                       # conv3 (out,in,1)
        bn1=bn(keys[3], keys[4], keys[5], keys[6], planes),
        bn2=bn(keys[7], keys[8], keys[9], keys[10], planes),
        bn3=bn(keys[11], keys[12], keys[13], keys[14], c4),
        fc1=nrm(keys[15], (cr, c4)),                            # Linear(c4->cr)
        fc2=nrm(keys[0], (c4, cr)),                             # Linear(cr->c4)
    )


def bottleneck_reference(x, params, eps=1e-5):
    """Plain-JAX reference (un-folded BN, lax conv) for correctness check."""
    def conv1d(h, w, padding):
        return jax.lax.conv_general_dilated(
            h, w, window_strides=(1,), padding=[(padding, padding)],
            dimension_numbers=("NCH", "OIH", "NCH"))

    def bn(h, p):
        g, b, m, v = p
        inv = g / jnp.sqrt(v + eps)
        return h * inv[None, :, None] + (b - m * inv)[None, :, None]

    K = params["w2"].shape[2]
    h = jax.nn.relu(bn(conv1d(x, params["w1"], 0), params["bn1"]))
    h = jax.nn.relu(bn(conv1d(h, params["w2"], (K - 1) // 2), params["bn2"]))
    h = bn(conv1d(h, params["w3"], 0), params["bn3"])
    y = jnp.mean(h, axis=2)                                     # (B, C4)
    y = jax.nn.relu(y @ params["fc1"].T)                        # (B, Cr)
    y = jax.nn.sigmoid(y @ params["fc2"].T)                     # (B, C4)
    h = h * y[:, :, None]
    return jax.nn.relu(h + x)


if __name__ == "__main__":
    # downsample=None & stride=1 requires inplanes == planes * 4.
    B, inplanes, planes, kernel_size, L = 2, 16, 4, 3, 128

    key = jax.random.PRNGKey(0)
    kx, kp = jax.random.split(key)
    x = jax.random.normal(kx, (B, inplanes, L), jnp.float32)    # PyTorch NCL
    params = make_params(kp, inplanes, planes, kernel_size)

    out = jax.block_until_ready(bottleneck_forward(x, params))
    ref = jax.block_until_ready(bottleneck_reference(x, params))

    assert out.shape == (B, planes * 4, L)
    assert jnp.allclose(out, ref, atol=1e-4, rtol=1e-4), "mismatch vs reference"

    print("KERNEL_OK")
</pallas_src>

<mosaic_0001>
module attributes {stable_mosaic.version = 11 : i64} {
  func.func @bottleneck_kernel(%arg0: i32, %arg1: memref<1x16x128xf32, #tpu.memory_space<vmem>>, %arg2: memref<4x16xf32, #tpu.memory_space<vmem>>, %arg3: memref<4x1xf32, #tpu.memory_space<vmem>>, %arg4: memref<4x12xf32, #tpu.memory_space<vmem>>, %arg5: memref<4x1xf32, #tpu.memory_space<vmem>>, %arg6: memref<16x4xf32, #tpu.memory_space<vmem>>, %arg7: memref<16x1xf32, #tpu.memory_space<vmem>>, %arg8: memref<16x1xf32, #tpu.memory_space<vmem>>, %arg9: memref<16x1xf32, #tpu.memory_space<vmem>>, %arg10: memref<1x16x128xf32, #tpu.memory_space<vmem>>) attributes {dimension_semantics = [#tpu.dimension_semantics<parallel>], iteration_bounds = array<i64: 2>, scalar_prefetch = 0 : i64, scratch_operands = 0 : i64, tpu.core_type = #tpu.core_type<tc>, window_params = [{transform_indices = @transform_0, window_bounds = array<i64: 1, 16, 128>}, {pipeline_mode = #tpu.pipeline_mode<synchronous>, transform_indices = @transform_1, window_bounds = array<i64: 4, 16>}, {pipeline_mode = #tpu.pipeline_mode<synchronous>, transform_indices = @transform_2, window_bounds = array<i64: 4, 1>}, {pipeline_mode = #tpu.pipeline_mode<synchronous>, transform_indices = @transform_3, window_bounds = array<i64: 4, 12>}, {pipeline_mode = #tpu.pipeline_mode<synchronous>, transform_indices = @transform_4, window_bounds = array<i64: 4, 1>}, {pipeline_mode = #tpu.pipeline_mode<synchronous>, transform_indices = @transform_5, window_bounds = array<i64: 16, 4>}, {pipeline_mode = #tpu.pipeline_mode<synchronous>, transform_indices = @transform_6, window_bounds = array<i64: 16, 1>}, {pipeline_mode = #tpu.pipeline_mode<synchronous>, transform_indices = @transform_7, window_bounds = array<i64: 16, 1>}, {pipeline_mode = #tpu.pipeline_mode<synchronous>, transform_indices = @transform_8, window_bounds = array<i64: 16, 1>}, {transform_indices = @transform_9, window_bounds = array<i64: 1, 16, 128>}]} {
    %c0 = arith.constant 0 : index
    %c0_0 = arith.constant 0 : index
    %c0_1 = arith.constant 0 : index
    %0 = vector.load %arg1[%c0, %c0_0, %c0_1] : memref<1x16x128xf32, #tpu.memory_space<vmem>>, vector<1x16x128xf32>
    %1 = vector.shape_cast %0 : vector<1x16x128xf32> to vector<16x128xf32>
    %c0_2 = arith.constant 0 : index
    %c0_3 = arith.constant 0 : index
    %2 = vector.load %arg2[%c0_2, %c0_3] : memref<4x16xf32, #tpu.memory_space<vmem>>, vector<4x16xf32>
    %cst = arith.constant dense<0.000000e+00> : vector<4x128xf32>
    %3 = tpu.matmul %2, %1, %cst {dimension_numbers = #tpu.dot_dimension_numbers<[1], [0], [0], [1], [0, 0, 1, 1], [], []>} : vector<4x16xf32>, vector<16x128xf32>, vector<4x128xf32> -> vector<4x128xf32>
    %c0_4 = arith.constant 0 : index
    %c0_5 = arith.constant 0 : index
    %4 = vector.load %arg3[%c0_4, %c0_5] : memref<4x1xf32, #tpu.memory_space<vmem>>, vector<4x1xf32>
    %5 = vector.broadcast %4 : vector<4x1xf32> to vector<4x128xf32>
    %6 = arith.addf %3, %5 : vector<4x128xf32>
    %cst_6 = arith.constant 0.000000e+00 : f32
    %7 = vector.broadcast %cst_6 : f32 to vector<4x128xf32>
    %8 = arith.maximumf %6, %7 : vector<4x128xf32>
    %9 = tpu.iota {dimensions = array<i32: 1>} : vector<4x128xi32>
    %c1_i32 = arith.constant 1 : i32
    %10 = tpu.dynamic_rotate %8 by %c1_i32 dim 1 : vector<4x128xf32>, i32 -> vector<4x128xf32>
    %c1_i32_7 = arith.constant 1 : i32
    %11 = vector.broadcast %c1_i32_7 : i32 to vector<4x128xi32>
    %12 = arith.cmpi sge, %9, %11 : vector<4x128xi32>
    %cst_8 = arith.constant 0.000000e+00 : f32
    %13 = vector.broadcast %cst_8 : f32 to vector<4x128xf32>
    %14 = arith.select %12, %10, %13 : vector<4x128xi1>, vector<4x128xf32>
    %c127_i32 = arith.constant 127 : i32
    %15 = tpu.dynamic_rotate %8 by %c127_i32 dim 1 : vector<4x128xf32>, i32 -> vector<4x128xf32>
    %c127_i32_9 = arith.constant 127 : i32
    %16 = vector.broadcast %c127_i32_9 : i32 to vector<4x128xi32>
    %17 = arith.cmpi slt, %9, %16 : vector<4x128xi32>
    %cst_10 = arith.constant 0.000000e+00 : f32
    %18 = vector.broadcast %cst_10 : f32 to vector<4x128xf32>
    %19 = arith.select %17, %15, %18 : vector<4x128xi1>, vector<4x128xf32>
    %20 = tpu.concatenate %14, %8, %19 in 0 : vector<4x128xf32>, vector<4x128xf32>, vector<4x128xf32> -> vector<12x128xf32>
    %c0_11 = arith.constant 0 : index
    %c0_12 = arith.constant 0 : index
    %21 = vector.load %arg4[%c0_11, %c0_12] : memref<4x12xf32, #tpu.memory_space<vmem>>, vector<4x12xf32>
    %cst_13 = arith.constant dense<0.000000e+00> : vector<4x128xf32>
    %22 = tpu.matmul %21, %20, %cst_13 {dimension_numbers = #tpu.dot_dimension_numbers<[1], [0], [0], [1], [0, 0, 1, 1], [], []>} : vector<4x12xf32>, vector<12x128xf32>, vector<4x128xf32> -> vector<4x128xf32>
    %c0_14 = arith.constant 0 : index
    %c0_15 = arith.constant 0 : index
    %23 = vector.load %arg5[%c0_14, %c0_15] : memref<4x1xf32, #tpu.memory_space<vmem>>, vector<4x1xf32>
    %24 = vector.broadcast %23 : vector<4x1xf32> to vector<4x128xf32>
    %25 = arith.addf %22, %24 : vector<4x128xf32>
    %cst_16 = arith.constant 0.000000e+00 : f32
    %26 = vector.broadcast %cst_16 : f32 to vector<4x128xf32>
    %27 = arith.maximumf %25, %26 : vector<4x128xf32>
    %c0_17 = arith.constant 0 : index
    %c0_18 = arith.constant 0 : index
    %28 = vector.load %arg6[%c0_17, %c0_18] : memref<16x4xf32, #tpu.memory_space<vmem>>, vector<16x4xf32>
    %cst_19 = arith.constant dense<0.000000e+00> : vector<16x128xf32>
    %29 = tpu.matmul %28, %27, %cst_19 {dimension_numbers = #tpu.dot_dimension_numbers<[1], [0], [0], [1], [0, 0, 1, 1], [], []>} : vector<16x4xf32>, vector<4x128xf32>, vector<16x128xf32> -> vector<16x128xf32>
    %c0_20 = arith.constant 0 : index
    %c0_21 = arith.constant 0 : index
    %30 = vector.load %arg7[%c0_20, %c0_21] : memref<16x1xf32, #tpu.memory_space<vmem>>, vector<16x1xf32>
    %31 = vector.broadcast %30 : vector<16x1xf32> to vector<16x128xf32>
    %32 = arith.addf %29, %31 : vector<16x128xf32>
    %cst_22 = arith.constant dense<0.000000e+00> : vector<16xf32>
    %33 = vector.multi_reduction <add>, %32, %cst_22 [1] : vector<16x128xf32> to vector<16xf32>
    %34 = vector.shape_cast %33 : vector<16xf32> to vector<16x1xf32>
    %cst_23 = arith.constant 1.280000e+02 : f32
    %35 = vector.broadcast %cst_23 : f32 to vector<16x1xf32>
    %36 = arith.divf %34, %35 : vector<16x1xf32>
    %c0_24 = arith.constant 0 : index
    %c0_25 = arith.constant 0 : index
    %37 = vector.load %arg8[%c0_24, %c0_25] : memref<16x1xf32, #tpu.memory_space<vmem>>, vector<16x1xf32>
    %38 = arith.mulf %37, %36 : vector<16x1xf32>
    %cst_26 = arith.constant dense<0.000000e+00> : vector<1xf32>
    %39 = vector.multi_reduction <add>, %38, %cst_26 [0] : vector<16x1xf32> to vector<1xf32>
    %40 = vector.shape_cast %39 : vector<1xf32> to vector<1x1xf32>
    %cst_27 = arith.constant 0.000000e+00 : f32
    %41 = vector.broadcast %cst_27 : f32 to vector<1x1xf32>
    %42 = arith.maximumf %40, %41 : vector<1x1xf32>
    %c0_28 = arith.constant 0 : index
    %c0_29 = arith.constant 0 : index
    %43 = vector.load %arg9[%c0_28, %c0_29] : memref<16x1xf32, #tpu.memory_space<vmem>>, vector<16x1xf32>
    %44 = vector.broadcast %42 : vector<1x1xf32> to vector<16x1xf32>
    %45 = arith.mulf %43, %44 : vector<16x1xf32>
    %cst_30 = arith.constant dense<0.000000e+00> : vector<16xf32>
    %46 = vector.multi_reduction <add>, %45, %cst_30 [1] : vector<16x1xf32> to vector<16xf32>
    %47 = vector.shape_cast %46 : vector<16xf32> to vector<16x1xf32>
    %48 = arith.negf %47 : vector<16x1xf32>
    %49 = math.exp %48 : vector<16x1xf32>
    %cst_31 = arith.constant 1.000000e+00 : f32
    %50 = vector.broadcast %cst_31 : f32 to vector<16x1xf32>
    %51 = arith.addf %50, %49 : vector<16x1xf32>
    %52 = arith.divf %50, %51 : vector<16x1xf32>
    %53 = vector.broadcast %52 : vector<16x1xf32> to vector<16x128xf32>
    %54 = arith.mulf %32, %53 : vector<16x128xf32>
    %55 = arith.addf %54, %1 : vector<16x128xf32>
    %cst_32 = arith.constant 0.000000e+00 : f32
    %56 = vector.broadcast %cst_32 : f32 to vector<16x128xf32>
    %57 = arith.maximumf %55, %56 : vector<16x128xf32>
    %c0_33 = arith.constant 0 : index
    %c0_34 = arith.constant 0 : index
    %c0_35 = arith.constant 0 : index
    %58 = vector.load %arg10[%c0_33, %c0_34, %c0_35] : memref<1x16x128xf32, #tpu.memory_space<vmem>>, vector<1x16x128xf32>
    %59 = vector.shape_cast %58 : vector<1x16x128xf32> to vector<16x128xf32>
    %60 = vector.shape_cast %57 : vector<16x128xf32> to vector<1x16x128xf32>
    tpu.vector_store %arg10[%c0_33, %c0_34, %c0_35], %60 {strides = array<i32>} : memref<1x16x128xf32, #tpu.memory_space<vmem>>, vector<1x16x128xf32>,
    return
  }
  func.func @transform_0(%arg0: i32) -> (i32, i32, i32) {
    %c0_i32 = arith.constant 0 : i32
    %c0_i32_0 = arith.constant 0 : i32
    %c0_i32_1 = arith.constant 0 : i32
    return %arg0, %c0_i32, %c0_i32_0 : i32, i32, i32
  }
  func.func @transform_1(%arg0: i32) -> (i32, i32) {
    %c0_i32 = arith.constant 0 : i32
    %c0_i32_0 = arith.constant 0 : i32
    %c0_i32_1 = arith.constant 0 : i32
    return %c0_i32, %c0_i32_0 : i32, i32
  }
  func.func @transform_2(%arg0: i32) -> (i32, i32) {
    %c0_i32 = arith.constant 0 : i32
    %c0_i32_0 = arith.constant 0 : i32
    %c0_i32_1 = arith.constant 0 : i32
    return %c0_i32, %c0_i32_0 : i32, i32
  }
  func.func @transform_3(%arg0: i32) -> (i32, i32) {
    %c0_i32 = arith.constant 0 : i32
    %c0_i32_0 = arith.constant 0 : i32
    %c0_i32_1 = arith.constant 0 : i32
    return %c0_i32, %c0_i32_0 : i32, i32
  }
  func.func @transform_4(%arg0: i32) -> (i32, i32) {
    %c0_i32 = arith.constant 0 : i32
    %c0_i32_0 = arith.constant 0 : i32
    %c0_i32_1 = arith.constant 0 : i32
    return %c0_i32, %c0_i32_0 : i32, i32
  }
  func.func @transform_5(%arg0: i32) -> (i32, i32) {
    %c0_i32 = arith.constant 0 : i32
    %c0_i32_0 = arith.constant 0 : i32
    %c0_i32_1 = arith.constant 0 : i32
    return %c0_i32, %c0_i32_0 : i32, i32
  }
  func.func @transform_6(%arg0: i32) -> (i32, i32) {
    %c0_i32 = arith.constant 0 : i32
    %c0_i32_0 = arith.constant 0 : i32
    %c0_i32_1 = arith.constant 0 : i32
    return %c0_i32, %c0_i32_0 : i32, i32
  }
  func.func @transform_7(%arg0: i32) -> (i32, i32) {
    %c0_i32 = arith.constant 0 : i32
    %c0_i32_0 = arith.constant 0 : i32
    %c0_i32_1 = arith.constant 0 : i32
    return %c0_i32, %c0_i32_0 : i32, i32
  }
  func.func @transform_8(%arg0: i32) -> (i32, i32) {
    %c0_i32 = arith.constant 0 : i32
    %c0_i32_0 = arith.constant 0 : i32
    %c0_i32_1 = arith.constant 0 : i32
    return %c0_i32, %c0_i32_0 : i32, i32
  }
  func.func @transform_9(%arg0: i32) -> (i32, i32, i32) {
    %c0_i32 = arith.constant 0 : i32
    %c0_i32_0 = arith.constant 0 : i32
    %c0_i32_1 = arith.constant 0 : i32
    return %arg0, %c0_i32, %c0_i32_0 : i32, i32, i32
  }
}

</mosaic_0001>

<llo_original>
// kernel: tpu_custom_call.1
$region0: #{tpu_custom_call.1}
  #allocation0 [shape = 'u32[]', space=smem, size = 0x4, offset = 0x4, fixed_abs, tag = 'smem constant byte address 0x4 - core index']
  #allocation1 [shape = 'u32[144,128]{1,0:T(1,128)}', space=vmem, size = 0x12000, scoped, tag = 'internal scratch']
  %s0 = inlined_call_operand.vmem [shape: f32[2,16,128], index: 0, kind: input, shape index: {}]
  %s1 = inlined_call_operand.vmem [shape: f32[4,16], index: 1, kind: input, shape index: {}]
  %s2 = inlined_call_operand.vmem [shape: f32[4,1], index: 2, kind: input, shape index: {}]
  %s3 = inlined_call_operand.vmem [shape: f32[4,12], index: 3, kind: input, shape index: {}]
  %s4 = inlined_call_operand.vmem [shape: f32[4,1], index: 4, kind: input, shape index: {}]
  %s5 = inlined_call_operand.vmem [shape: f32[16,4], index: 5, kind: input, shape index: {}]
  %s6 = inlined_call_operand.vmem [shape: f32[16,1], index: 6, kind: input, shape index: {}]
  %s7 = inlined_call_operand.vmem [shape: f32[16,1], index: 7, kind: input, shape index: {}]
  %s8 = inlined_call_operand.vmem [shape: f32[16,1], index: 8, kind: input, shape index: {}]
  %s9 = inlined_call_operand.hbm [shape: f32[2,16,128], index: 9, kind: output, shape index: {}]
  %s10 = sld [smem:[#allocation0]]
  $region69: #{tpu_custom_call.1} parent=0
    _
  %s12 = ssub.s32 1, %s10
  %s13 = scalar_select 0, %s12, %s10
  $region1: #{tpu_custom_call.1} parent=0
    #allocation2 [shape = 'u8[16384]{0}', space=vmem, size = 0x4000, scoped, tag = 'output window, operand 0']
    #allocation3 [shape = 's32[2]{0}', space=sflag, size = 0x8, scoped, tag = 'scoped memory for tpu_custom_call.1']
    %14 = vsyncpa [#allocation3], 0
    %s15 = scalar_lea.sflag [#allocation3], 1
    %16 = vsyncpa %s15, 0
    loop: start=0, step=1, limit=4
    $region2: #{tpu_custom_call.1} parent=1 // loop_pre_header
      _
    $region3: #{tpu_custom_call.1} parent=1 // loop_header
      %s18 = sphi 0, %s22
      %p19 = scmp.ge.s32.totalorder %s18, 4
      %s28 = sphi 0, %s30
      %s31 = sphi 0, %s28
      %s32 = sphi 0, %s31
      %s48 = sphi 0, %s32
      %s52 = sphi 0, %s52
      %s54 = sphi 0, %s52
      %s55 = sphi 0, %s54
      %s69 = sphi 0, %s55
      %s73 = sphi 0, %s73
      %s75 = sphi 0, %s73
      %s76 = sphi 0, %s75
      %s90 = sphi 0, %s76
      %s94 = sphi 0, %s94
      %s96 = sphi 0, %s94
      %s97 = sphi 0, %s96
      %s111 = sphi 0, %s97
      %s115 = sphi 0, %s115
      %s117 = sphi 0, %s115
      %s118 = sphi 0, %s117
      %s132 = sphi 0, %s118
      %s136 = sphi 0, %s136
      %s138 = sphi 0, %s136
      %s139 = sphi 0, %s138
      %s153 = sphi 0, %s139
      %s157 = sphi 0, %s157
      %s159 = sphi 0, %s157
      %s160 = sphi 0, %s159
      %s174 = sphi 0, %s160
      %s178 = sphi 0, %s178
      %s180 = sphi 0, %s178
      %s181 = sphi 0, %s180
      %s195 = sphi 0, %s181
      %s199 = sphi 0, %s199
      %s201 = sphi 0, %s199
      %s202 = sphi 0, %s201
      %s216 = sphi 0, %s202
      %s222 = sphi 0, %s224
      %s225 = sphi 0, %s222
      %s226 = sphi 0, %s225
      %s242 = sphi 0, %s226
    $region4: #{tpu_custom_call.1} parent=1 // loop_header_branch
      %21 = sbr.rel (%p19) target = $region8
    $region5: #{tpu_custom_call.1} parent=1 // loop_body
      %s23 = ssub.s32 %s18, 1
      %s24 = ssub.s32 %s18, 2
      %s25 = sadd.s32 %s18, 1
      %s26 = ssub.s32 %s18, %s25
      %p27 = scmp.eq.s32.totalorder %s26, 0
      %s29 = sadd.s32 %s28, 1
      %s30 = scalar_select %p27, %s28, %s29
      %p33 = pneg %p27
      %p34 = scmp.eq.s32.totalorder %s18, 1
      %p35 = por %p33, %p34
      %p36 = scmp.ne.s32.totalorder %s28, %s31
      %p37 = scmp.eq.s32.totalorder %s18, 0
      %p38 = por %p36, %p37
      %p39 = scmp.ne.s32.totalorder %s28, %s31
      %p40 = scmp.eq.s32.totalorder %s23, 1
      %p41 = por %p39, %p40
      %p42 = scmp.ne.s32.totalorder %s31, %s32
      %p43 = scmp.eq.s32.totalorder %s23, 0
      %p44 = por %p42, %p43
      %p45 = scmp.ne.s32.totalorder %s31, %s32
      %p46 = scmp.eq.s32.totalorder %s24, 1
      %p47 = por %p45, %p46
      %p49 = scmp.ne.s32.totalorder %s32, %s48
      %p50 = scmp.eq.s32.totalorder %s24, 0
      %p51 = por %p49, %p50
      %s53 = sadd.s32 %s52, 1
      %p56 = scmp.eq.s32.totalorder %s18, 1
      %p57 = scmp.ne.s32.totalorder %s52, %s54
      %p58 = scmp.eq.s32.totalorder %s18, 0
      %p59 = por %p57, %p58
      %p60 = scmp.ne.s32.totalorder %s52, %s54
      %p61 = scmp.eq.s32.totalorder %s23, 1
      %p62 = por %p60, %p61
      %p63 = scmp.ne.s32.totalorder %s54, %s55
      %p64 = scmp.eq.s32.totalorder %s23, 0
      %p65 = por %p63, %p64
      %p66 = scmp.ne.s32.totalorder %s54, %s55
      %p67 = scmp.eq.s32.totalorder %s24, 1
      %p68 = por %p66, %p67
      %p70 = scmp.ne.s32.totalorder %s55, %s69
      %p71 = scmp.eq.s32.totalorder %s24, 0
      %p72 = por %p70, %p71
      %s74 = sadd.s32 %s73, 1
      %p77 = scmp.eq.s32.totalorder %s18, 1
      %p78 = scmp.ne.s32.totalorder %s73, %s75
      %p79 = scmp.eq.s32.totalorder %s18, 0
      %p80 = por %p78, %p79
      %p81 = scmp.ne.s32.totalorder %s73, %s75
      %p82 = scmp.eq.s32.totalorder %s23, 1
      %p83 = por %p81, %p82
      %p84 = scmp.ne.s32.totalorder %s75, %s76
      %p85 = scmp.eq.s32.totalorder %s23, 0
      %p86 = por %p84, %p85
      %p87 = scmp.ne.s32.totalorder %s75, %s76
      %p88 = scmp.eq.s32.totalorder %s24, 1
      %p89 = por %p87, %p88
      %p91 = scmp.ne.s32.totalorder %s76, %s90
      %p92 = scmp.eq.s32.totalorder %s24, 0
      %p93 = por %p91, %p92
      %s95 = sadd.s32 %s94, 1
      %p98 = scmp.eq.s32.totalorder %s18, 1
      %p99 = scmp.ne.s32.totalorder %s94, %s96
      %p100 = scmp.eq.s32.totalorder %s18, 0
      %p101 = por %p99, %p100
      %p102 = scmp.ne.s32.totalorder %s94, %s96
      %p103 = scmp.eq.s32.totalorder %s23, 1
      %p104 = por %p102, %p103
      %p105 = scmp.ne.s32.totalorder %s96, %s97
      %p106 = scmp.eq.s32.totalorder %s23, 0
      %p107 = por %p105, %p106
      %p108 = scmp.ne.s32.totalorder %s96, %s97
      %p109 = scmp.eq.s32.totalorder %s24, 1
      %p110 = por %p108, %p109
      %p112 = scmp.ne.s32.totalorder %s97, %s111
      %p113 = scmp.eq.s32.totalorder %s24, 0
      %p114 = por %p112, %p113
      %s116 = sadd.s32 %s115, 1
      %p119 = scmp.eq.s32.totalorder %s18, 1
      %p120 = scmp.ne.s32.totalorder %s115, %s117
      %p121 = scmp.eq.s32.totalorder %s18, 0
      %p122 = por %p120, %p121
      %p123 = scmp.ne.s32.totalorder %s115, %s117
      %p124 = scmp.eq.s32.totalorder %s23, 1
      %p125 = por %p123, %p124
      %p126 = scmp.ne.s32.totalorder %s117, %s118
      %p127 = scmp.eq.s32.totalorder %s23, 0
      %p128 = por %p126, %p127
      %p129 = scmp.ne.s32.totalorder %s117, %s118
      %p130 = scmp.eq.s32.totalorder %s24, 1
      %p131 = por %p129, %p130
      %p133 = scmp.ne.s32.totalorder %s118, %s132
      %p134 = scmp.eq.s32.totalorder %s24, 0
      %p135 = por %p133, %p134
      %s137 = sadd.s32 %s136, 1
      %p140 = scmp.eq.s32.totalorder %s18, 1
      %p141 = scmp.ne.s32.totalorder %s136, %s138
      %p142 = scmp.eq.s32.totalorder %s18, 0
      %p143 = por %p141, %p142
      %p144 = scmp.ne.s32.totalorder %s136, %s138
      %p145 = scmp.eq.s32.totalorder %s23, 1
      %p146 = por %p144, %p145
      %p147 = scmp.ne.s32.totalorder %s138, %s139
      %p148 = scmp.eq.s32.totalorder %s23, 0
      %p149 = por %p147, %p148
      %p150 = scmp.ne.s32.totalorder %s138, %s139
      %p151 = scmp.eq.s32.totalorder %s24, 1
      %p152 = por %p150, %p151
      %p154 = scmp.ne.s32.totalorder %s139, %s153
      %p155 = scmp.eq.s32.totalorder %s24, 0
      %p156 = por %p154, %p155
      %s158 = sadd.s32 %s157, 1
      %p161 = scmp.eq.s32.totalorder %s18, 1
      %p162 = scmp.ne.s32.totalorder %s157, %s159
      %p163 = scmp.eq.s32.totalorder %s18, 0
      %p164 = por %p162, %p163
      %p165 = scmp.ne.s32.totalorder %s157, %s159
      %p166 = scmp.eq.s32.totalorder %s23, 1
      %p167 = por %p165, %p166
      %p168 = scmp.ne.s32.totalorder %s159, %s160
      %p169 = scmp.eq.s32.totalorder %s23, 0
      %p170 = por %p168, %p169
      %p171 = scmp.ne.s32.totalorder %s159, %s160
      %p172 = scmp.eq.s32.totalorder %s24, 1
      %p173 = por %p171, %p172
      %p175 = scmp.ne.s32.totalorder %s160, %s174
      %p176 = scmp.eq.s32.totalorder %s24, 0
      %p177 = por %p175, %p176
      %s179 = sadd.s32 %s178, 1
      %p182 = scmp.eq.s32.totalorder %s18, 1
      %p183 = scmp.ne.s32.totalorder %s178, %s180
      %p184 = scmp.eq.s32.totalorder %s18, 0
      %p185 = por %p183, %p184
      %p186 = scmp.ne.s32.totalorder %s178, %s180
      %p187 = scmp.eq.s32.totalorder %s23, 1
      %p188 = por %p186, %p187
      %p189 = scmp.ne.s32.totalorder %s180, %s181
      %p190 = scmp.eq.s32.totalorder %s23, 0
      %p191 = por %p189, %p190
      %p192 = scmp.ne.s32.totalorder %s180, %s181
      %p193 = scmp.eq.s32.totalorder %s24, 1
      %p194 = por %p192, %p193
      %p196 = scmp.ne.s32.totalorder %s181, %s195
      %p197 = scmp.eq.s32.totalorder %s24, 0
      %p198 = por %p196, %p197
      %s200 = sadd.s32 %s199, 1
      %p203 = scmp.eq.s32.totalorder %s18, 1
      %p204 = scmp.ne.s32.totalorder %s199, %s201
      %p205 = scmp.eq.s32.totalorder %s18, 0
      %p206 = por %p204, %p205
      %p207 = scmp.ne.s32.totalorder %s199, %s201
      %p208 = scmp.eq.s32.totalorder %s23, 1
      %p209 = por %p207, %p208
      %p210 = scmp.ne.s32.totalorder %s201, %s202
      %p211 = scmp.eq.s32.totalorder %s23, 0
      %p212 = por %p210, %p211
      %p213 = scmp.ne.s32.totalorder %s201, %s202
      %p214 = scmp.eq.s32.totalorder %s24, 1
      %p215 = por %p213, %p214
      %p217 = scmp.ne.s32.totalorder %s202, %s216
      %p218 = scmp.eq.s32.totalorder %s24, 0
      %p219 = por %p217, %p218
      %s220 = ssub.s32 %s18, %s25
      %p221 = scmp.eq.s32.totalorder %s220, 0
      %s223 = sadd.s32 %s222, 1
      %s224 = scalar_select %p221, %s222, %s223
      %p227 = pneg %p221
      %p228 = scmp.eq.s32.totalorder %s18, 1
      %p229 = por %p227, %p228
      %p230 = scmp.ne.s32.totalorder %s222, %s225
      %p231 = scmp.eq.s32.totalorder %s18, 0
      %p232 = por %p230, %p231
      %p233 = scmp.ne.s32.totalorder %s222, %s225
      %p234 = scmp.eq.s32.totalorder %s23, 1
      %p235 = por %p233, %p234
      %p236 = scmp.ne.s32.totalorder %s225, %s226
      %p237 = scmp.eq.s32.totalorder %s23, 0
      %p238 = por %p236, %p237
      %p239 = scmp.ne.s32.totalorder %s225, %s226
      %p240 = scmp.eq.s32.totalorder %s24, 1
      %p241 = por %p239, %p240
      %p243 = scmp.ne.s32.totalorder %s226, %s242
      %p244 = scmp.eq.s32.totalorder %s24, 0
      %p245 = por %p243, %p244
      %p246 = scmp.le.s32.totalorder 1, %s18
      %p247 = scmp.lt.s32.totalorder %s18, 3
      %p248 = pnand %p246, %p247
      %p249 = pneg %p248
      // Predicated region
      $region9: #{tpu_custom_call.1} parent=5 // pred_check
        _
      $region10: #{tpu_custom_call.1} parent=5 // pred_check_branch
        %251 = sbr.rel (%p248) target = $region12
      $region11: #{tpu_custom_call.1} parent=5 // pred_region
        %s252 = ssub.s32 %s18, 1
        // Predicated region
        $region13: #{tpu_custom_call.1} parent=11 // pred_check
          %p253 = pneg %p65
        $region14: #{tpu_custom_call.1} parent=11 // pred_check_branch
          %255 = sbr.rel (%p253) target = $region16
        $region15: #{tpu_custom_call.1} parent=11 // pred_region
          _
        $region16: #{tpu_custom_call.1} parent=11 // pred_fallthru
          _
        // Predicated region
        $region17: #{tpu_custom_call.1} parent=11 // pred_check
          %p256 = pneg %p86
        $region18: #{tpu_custom_call.1} parent=11 // pred_check_branch
          %258 = sbr.rel (%p256) target = $region20
        $region19: #{tpu_custom_call.1} parent=11 // pred_region
          _
        $region20: #{tpu_custom_call.1} parent=11 // pred_fallthru
          _
        // Predicated region
        $region21: #{tpu_custom_call.1} parent=11 // pred_check
          %p259 = pneg %p107
        $region22: #{tpu_custom_call.1} parent=11 // pred_check_branch
          %261 = sbr.rel (%p259) target = $region24
        $region23: #{tpu_custom_call.1} parent=11 // pred_region
          _
        $region24: #{tpu_custom_call.1} parent=11 // pred_fallthru
          _
        // Predicated region
        $region25: #{tpu_custom_call.1} parent=11 // pred_check
          %p262 = pneg %p128
        $region26: #{tpu_custom_call.1} parent=11 // pred_check_branch
          %264 = sbr.rel (%p262) target = $region28
        $region27: #{tpu_custom_call.1} parent=11 // pred_region
          _
        $region28: #{tpu_custom_call.1} parent=11 // pred_fallthru
          _
        // Predicated region
        $region29: #{tpu_custom_call.1} parent=11 // pred_check
          %p265 = pneg %p149
        $region30: #{tpu_custom_call.1} parent=11 // pred_check_branch
          %267 = sbr.rel (%p265) target = $region32
        $region31: #{tpu_custom_call.1} parent=11 // pred_region
          _
        $region32: #{tpu_custom_call.1} parent=11 // pred_fallthru
          _
        // Predicated region
        $region33: #{tpu_custom_call.1} parent=11 // pred_check
          %p268 = pneg %p170
        $region34: #{tpu_custom_call.1} parent=11 // pred_check_branch
          %270 = sbr.rel (%p268) target = $region36
        $region35: #{tpu_custom_call.1} parent=11 // pred_region
          _
        $region36: #{tpu_custom_call.1} parent=11 // pred_fallthru
          _
        // Predicated region
        $region37: #{tpu_custom_call.1} parent=11 // pred_check
          %p271 = pneg %p191
        $region38: #{tpu_custom_call.1} parent=11 // pred_check_branch
          %273 = sbr.rel (%p271) target = $region40
        $region39: #{tpu_custom_call.1} parent=11 // pred_region
          _
        $region40: #{tpu_custom_call.1} parent=11 // pred_fallthru
          _
        // Predicated region
        $region41: #{tpu_custom_call.1} parent=11 // pred_check
          %p274 = pneg %p212
        $region42: #{tpu_custom_call.1} parent=11 // pred_check_branch
          %276 = sbr.rel (%p274) target = $region44
        $region43: #{tpu_custom_call.1} parent=11 // pred_region
          _
        $region44: #{tpu_custom_call.1} parent=11 // pred_fallthru
          _
      $region12: #{tpu_custom_call.1} parent=5 // pred_fallthru
        _
      %p277 = scmp.lt.s32.totalorder %s18, 2
      // Predicated region
      $region45: #{tpu_custom_call.1} parent=5 // pred_check
        %p278 = pneg %p277
      $region46: #{tpu_custom_call.1} parent=5 // pred_check_branch
        %280 = sbr.rel (%p278) target = $region48
      $region47: #{tpu_custom_call.1} parent=5 // pred_region
        // Predicated region
        $region49: #{tpu_custom_call.1} parent=47 // pred_check
          %p281 = pneg %p38
        $region50: #{tpu_custom_call.1} parent=47 // pred_check_branch
          %283 = sbr.rel (%p281) target = $region52
        $region51: #{tpu_custom_call.1} parent=47 // pred_region
          %p284 = scmp.lt.s32.totalorder %s18, 1
          %s285 = scalar_select %p284, %s18, 1
          %s286 = smul.addr %s285, 2
          %s287 = smul.addr %s286, 8
          %s288 = scalar_lea.vmem %s0, %s287
        $region52: #{tpu_custom_call.1} parent=47 // pred_fallthru
          _
      $region48: #{tpu_custom_call.1} parent=5 // pred_fallthru
        _
      %p289 = scmp.le.s32.totalorder 1, %s18
      %p290 = scmp.lt.s32.totalorder %s18, 3
      %p291 = pnand %p289, %p290
      %p292 = pneg %p291
      // Predicated region
      $region53: #{tpu_custom_call.1} parent=5 // pred_check
        _
      $region54: #{tpu_custom_call.1} parent=5 // pred_check_branch
        %294 = sbr.rel (%p291) target = $region56
      $region55: #{tpu_custom_call.1} parent=5 // pred_region
        %s295 = ssub.s32 %s18, 1
        %p296 = scmp.lt.s32.totalorder %s23, 1
        %s297 = scalar_select %p296, %s23, 1
        %s298 = smul.addr %s297, 2
        %s299 = smul.addr %s298, 8
        %s300 = scalar_lea.vmem %s0, %s299
        %p301 = pneg %p44
        %p302 = pneg %p41
        %p303 = pneg %p65
        %p304 = pneg %p62
        %p305 = pneg %p86
        %p306 = pneg %p83
        %p307 = pneg %p107
        %p308 = pneg %p104
        %p309 = pneg %p128
        %p310 = pneg %p125
        %p311 = pneg %p149
        %p312 = pneg %p146
        %p313 = pneg %p170
        %p314 = pneg %p167
        %p315 = pneg %p191
        %p316 = pneg %p188
        %p317 = pneg %p212
        %p318 = pneg %p209
        %p319 = pneg %p238
        %p320 = pneg %p235
        %s321 = sand.u32 %s225, 1
        %s322 = scalar_lea.sflag [#allocation3], %s321
        %s323 = sand.u32 %s225, 1
        %s324 = smul.addr %s323, 16
        %s325 = scalar_lea.vmem [#allocation2], %s324
        %p326 = scmp.lt.s32.totalorder %s23, 1
        %s327 = scalar_select %p326, %s23, 1
        %s328 = smul.addr %s327, 2
        %s329 = smul.addr %s328, 8
        %s330 = scalar_lea.vmem %s0, %s329
        %v331 = vld [vmem:[%s330] sm:$0xff]
        %v332 = vld [vmem:[%s330 + $0x8] sm:$0xff]
        %v333 = vld [vmem:[%s1] sm:$0xf]
        %v334 = vld [vmem:[%s2] sm:$0xf]
        %336 = vset.pattern.permute.xlu0 0
        %337 = vperm.xlu0 %336, %v334
        %v338 = vpop.permute.xlu0 %337
        %vm340 = vcmask 130048
        %v342 = vsel %vm340, %v333, 0
        %344 = vmatprep.subr.mxu0 0.0
        %345 = vmatpush1.msra.mxu0 %v331
        %346 = vmatprep.subr.mxu0 0.0
        %347 = vmatpush1.msra.mxu0 %v332
        %348 = vmatprep.subr.mxu0 0.0
        %349 = vmatpush1.msra.mxu0 0.0
        %350 = vmatprep.subr.mxu0 0.0
        %351 = vmatpush1.msra.mxu0 0.0
        %352 = vmatprep.subr.mxu0 0.0
        %353 = vmatpush1.msra.mxu0 0.0
        %354 = vmatprep.subr.mxu0 0.0
        %355 = vmatpush1.msra.mxu0 0.0
        %356 = vmatprep.subr.mxu0 0.0
        %357 = vmatpush1.msra.mxu0 0.0
        %358 = vmatprep.subr.mxu0 0.0
        %359 = vmatpush1.msra.mxu0 0.0
        %360 = vmatprep.subr.mxu0 0.0
        %361 = vmatpush1.msra.mxu0 0.0
        %362 = vmatprep.subr.mxu0 0.0
        %363 = vmatpush1.msra.mxu0 0.0
        %364 = vmatprep.subr.mxu0 0.0
        %365 = vmatpush1.msra.mxu0 0.0
        %366 = vmatprep.subr.mxu0 0.0
        %367 = vmatpush1.msra.mxu0 0.0
        %368 = vmatprep.subr.mxu0 0.0
        %369 = vmatpush1.msra.mxu0 0.0
        %370 = vmatprep.subr.mxu0 0.0
        %371 = vmatpush1.msra.mxu0 0.0
        %372 = vmatprep.subr.mxu0 0.0
        %373 = vmatpush1.msra.mxu0 0.0
        %374 = vmatprep.subr.mxu0 0.0
        %375 = vmatpush1.msra.mxu0 0.0
        %376 = vmatprep.subr.mxu0 0.0
        %377 = vmatpush1.msra.mxu0 0.0
        %378 = vmatprep.subr.mxu0 0.0
        %379 = vmatpush1.msra.mxu0 0.0
        %380 = vmatprep.subr.mxu0 0.0
        %381 = vmatpush1.msra.mxu0 0.0
        %382 = vmatprep.subr.mxu0 0.0
        %383 = vmatpush1.msra.mxu0 0.0
        %384 = vmatprep.subr.mxu0 0.0
        %385 = vmatpush1.msra.mxu0 0.0
        %386 = vmatprep.subr.mxu0 0.0
        %387 = vmatpush1.msra.mxu0 0.0
        %388 = vmatprep.subr.mxu0 0.0
        %389 = vmatpush1.msra.mxu0 0.0
        %390 = vmatprep.subr.mxu0 0.0
        %391 = vmatpush1.msra.mxu0 0.0
        %392 = vmatprep.subr.mxu0 0.0
        %393 = vmatpush1.msra.mxu0 0.0
        %394 = vmatprep.subr.mxu0 0.0
        %395 = vmatpush1.msra.mxu0 0.0
        %396 = vmatprep.subr.mxu0 0.0
        %397 = vmatpush1.msra.mxu0 0.0
        %398 = vmatprep.subr.mxu0 0.0
        %399 = vmatpush1.msra.mxu0 0.0
        %400 = vmatprep.subr.mxu0 0.0
        %401 = vmatpush1.msra.mxu0 0.0
        %402 = vmatprep.subr.mxu0 0.0
        %403 = vmatpush1.msra.mxu0 0.0
        %404 = vmatprep.subr.mxu0 0.0
        %405 = vmatpush1.msra.mxu0 0.0
        %406 = vmatprep.subr.mxu0 0.0
        %407 = vmatpush1.msra.mxu0 0.0
        %408 = vmatprep.mubr.f32.mxu0 0.0
        %409 = vmatmul.mubr.f32.gmra.mrb[0].mxu0 %v342
        %v410 = vpop.f32.mrb[0].mxu0
        %v411 = vadd.f32 %v338, %v410
        %v412 = vpop.f32.mrb[0].mxu0
        %413 = vdwg.mxu0
        %v414 = vmax.f32 %v411, 0.0
        %v415 = vlaneseq
        %v416 = vand.u32 %v415, 127
        %417 = vrot.lane.b32.xlu0 %v414, 1
        %v418 = vpop.permute.xlu0 %417
        %vm419 = vcmp.ge.s32.totalorder %v416, 1
        %v420 = vsel %vm419, %v418, 0.0
        %421 = vrot.lane.b32.xlu0 %v414, 127
        %v422 = vpop.permute.xlu0 %421
        %vm423 = vcmp.lt.s32.totalorder %v416, 127
        %v424 = vsel %vm423, %v422, 0.0
        %v426 = vrot.slane %v414, 4
        %vm428 = vcmask 1043456
        %v429 = vsel %vm428, %v420, %v426
        %v430 = vld [vmem:[%s3] sm:$0xf]
        %v431 = vld [vmem:[%s4] sm:$0xf]
        %433 = vset.pattern.permute.xlu0 0
        %434 = vperm.xlu0 %433, %v431
        %v435 = vpop.permute.xlu0 %434
        %vm437 = vcmask 97280
        %v439 = vsel %vm437, %v430, 0
        %v442 = vsel %vm428, %v424, 0
        %444 = vmatprep.subr.mxu0 0.0
        %445 = vmatpush1.msra.mxu0 %v429
        %446 = vmatprep.subr.mxu0 0.0
        %447 = vmatpush1.msra.mxu0 %v442
        %448 = vmatprep.subr.mxu0 0.0
        %449 = vmatpush1.msra.mxu0 0.0
        %450 = vmatprep.subr.mxu0 0.0
        %451 = vmatpush1.msra.mxu0 0.0
        %452 = vmatprep.subr.mxu0 0.0
        %453 = vmatpush1.msra.mxu0 0.0
        %454 = vmatprep.subr.mxu0 0.0
        %455 = vmatpush1.msra.mxu0 0.0
        %456 = vmatprep.subr.mxu0 0.0
        %457 = vmatpush1.msra.mxu0 0.0
        %458 = vmatprep.subr.mxu0 0.0
        %459 = vmatpush1.msra.mxu0 0.0
        %460 = vmatprep.subr.mxu0 0.0
        %461 = vmatpush1.msra.mxu0 0.0
        %462 = vmatprep.subr.mxu0 0.0
        %463 = vmatpush1.msra.mxu0 0.0
        %464 = vmatprep.subr.mxu0 0.0
        %465 = vmatpush1.msra.mxu0 0.0
        %466 = vmatprep.subr.mxu0 0.0
        %467 = vmatpush1.msra.mxu0 0.0
        %468 = vmatprep.subr.mxu0 0.0
        %469 = vmatpush1.msra.mxu0 0.0
        %470 = vmatprep.subr.mxu0 0.0
        %471 = vmatpush1.msra.mxu0 0.0
        %472 = vmatprep.subr.mxu0 0.0
        %473 = vmatpush1.msra.mxu0 0.0
        %474 = vmatprep.subr.mxu0 0.0
        %475 = vmatpush1.msra.mxu0 0.0
        %476 = vmatprep.subr.mxu0 0.0
        %477 = vmatpush1.msra.mxu0 0.0
        %478 = vmatprep.subr.mxu0 0.0
        %479 = vmatpush1.msra.mxu0 0.0
        %480 = vmatprep.subr.mxu0 0.0
        %481 = vmatpush1.msra.mxu0 0.0
        %482 = vmatprep.subr.mxu0 0.0
        %483 = vmatpush1.msra.mxu0 0.0
        %484 = vmatprep.subr.mxu0 0.0
        %485 = vmatpush1.msra.mxu0 0.0
        %486 = vmatprep.subr.mxu0 0.0
        %487 = vmatpush1.msra.mxu0 0.0
        %488 = vmatprep.subr.mxu0 0.0
        %489 = vmatpush1.msra.mxu0 0.0
        %490 = vmatprep.subr.mxu0 0.0
        %491 = vmatpush1.msra.mxu0 0.0
        %492 = vmatprep.subr.mxu0 0.0
        %493 = vmatpush1.msra.mxu0 0.0
        %494 = vmatprep.subr.mxu0 0.0
        %495 = vmatpush1.msra.mxu0 0.0
        %496 = vmatprep.subr.mxu0 0.0
        %497 = vmatpush1.msra.mxu0 0.0
        %498 = vmatprep.subr.mxu0 0.0
        %499 = vmatpush1.msra.mxu0 0.0
        %500 = vmatprep.subr.mxu0 0.0
        %501 = vmatpush1.msra.mxu0 0.0
        %502 = vmatprep.subr.mxu0 0.0
        %503 = vmatpush1.msra.mxu0 0.0
        %504 = vmatprep.subr.mxu0 0.0
        %505 = vmatpush1.msra.mxu0 0.0
        %506 = vmatprep.subr.mxu0 0.0
        %507 = vmatpush1.msra.mxu0 0.0
        %508 = vmatprep.mubr.f32.mxu0 0.0
        %509 = vmatmul.mubr.f32.gmra.mrb[0].mxu0 %v439
        %v510 = vpop.f32.mrb[0].mxu0
        %v511 = vadd.f32 %v435, %v510
        %v512 = vpop.f32.mrb[0].mxu0
        %513 = vdwg.mxu0
        %v514 = vmax.f32 %v511, 0.0
        %v515 = vld [vmem:[%s5] sm:$0xff]
        %v516 = vld [vmem:[%s5 + $0x8] sm:$0xff]
        %v517 = vld [vmem:[%s6] sm:$0xff]
        %v518 = vld [vmem:[%s6 + $0x8] sm:$0xff]
        %520 = vset.pattern.permute.xlu0 0
        %521 = vperm.xlu0 %520, %v517
        %v522 = vpop.permute.xlu0 %521
        %525 = vset.pattern.permute.xlu0 0
        %526 = vperm.xlu0 %525, %v518
        %v527 = vpop.permute.xlu0 %526
        %vm529 = vcmask 31744
        %v531 = vsel %vm529, %v515, 0
        %v534 = vsel %vm529, %v516, 0
        %v537 = vsel %vm428, %v514, 0
        %539 = vmatprep.subr.mxu0 0.0
        %540 = vmatpush1.msra.mxu0 %v537
        %541 = vmatprep.subr.mxu0 0.0
        %542 = vmatpush1.msra.mxu0 0.0
        %543 = vmatprep.subr.mxu0 0.0
        %544 = vmatpush1.msra.mxu0 0.0
        %545 = vmatprep.subr.mxu0 0.0
        %546 = vmatpush1.msra.mxu0 0.0
        %547 = vmatprep.subr.mxu0 0.0
        %548 = vmatpush1.msra.mxu0 0.0
        %549 = vmatprep.subr.mxu0 0.0
        %550 = vmatpush1.msra.mxu0 0.0
        %551 = vmatprep.subr.mxu0 0.0
        %552 = vmatpush1.msra.mxu0 0.0
        %553 = vmatprep.subr.mxu0 0.0
        %554 = vmatpush1.msra.mxu0 0.0
        %555 = vmatprep.subr.mxu0 0.0
        %556 = vmatpush1.msra.mxu0 0.0
        %557 = vmatprep.subr.mxu0 0.0
        %558 = vmatpush1.msra.mxu0 0.0
        %559 = vmatprep.subr.mxu0 0.0
        %560 = vmatpush1.msra.mxu0 0.0
        %561 = vmatprep.subr.mxu0 0.0
        %562 = vmatpush1.msra.mxu0 0.0
        %563 = vmatprep.subr.mxu0 0.0
        %564 = vmatpush1.msra.mxu0 0.0
        %565 = vmatprep.subr.mxu0 0.0
        %566 = vmatpush1.msra.mxu0 0.0
        %567 = vmatprep.subr.mxu0 0.0
        %568 = vmatpush1.msra.mxu0 0.0
        %569 = vmatprep.subr.mxu0 0.0
        %570 = vmatpush1.msra.mxu0 0.0
        %571 = vmatprep.subr.mxu0 0.0
        %572 = vmatpush1.msra.mxu0 0.0
        %573 = vmatprep.subr.mxu0 0.0
        %574 = vmatpush1.msra.mxu0 0.0
        %575 = vmatprep.subr.mxu0 0.0
        %576 = vmatpush1.msra.mxu0 0.0
        %577 = vmatprep.subr.mxu0 0.0
        %578 = vmatpush1.msra.mxu0 0.0
        %579 = vmatprep.subr.mxu0 0.0
        %580 = vmatpush1.msra.mxu0 0.0
        %581 = vmatprep.subr.mxu0 0.0
        %582 = vmatpush1.msra.mxu0 0.0
        %583 = vmatprep.subr.mxu0 0.0
        %584 = vmatpush1.msra.mxu0 0.0
        %585 = vmatprep.subr.mxu0 0.0
        %586 = vmatpush1.msra.mxu0 0.0
        %587 = vmatprep.subr.mxu0 0.0
        %588 = vmatpush1.msra.mxu0 0.0
        %589 = vmatprep.subr.mxu0 0.0
        %590 = vmatpush1.msra.mxu0 0.0
        %591 = vmatprep.subr.mxu0 0.0
        %592 = vmatpush1.msra.mxu0 0.0
        %593 = vmatprep.subr.mxu0 0.0
        %594 = vmatpush1.msra.mxu0 0.0
        %595 = vmatprep.subr.mxu0 0.0
        %596 = vmatpush1.msra.mxu0 0.0
        %597 = vmatprep.subr.mxu0 0.0
        %598 = vmatpush1.msra.mxu0 0.0
        %599 = vmatprep.subr.mxu0 0.0
        %600 = vmatpush1.msra.mxu0 0.0
        %601 = vmatprep.subr.mxu0 0.0
        %602 = vmatpush1.msra.mxu0 0.0
        %603 = vmatprep.mubr.f32.mxu0 0.0
        %604 = vmatmul.mubr.f32.gmra.mrb[0].mxu0 %v531
        %v605 = vpop.f32.mrb[0].mxu0
        %v606 = vadd.f32 %v522, %v605
        %v607 = vpop.f32.mrb[0].mxu0
        %608 = vmatprep.mubr.f32.mxu0 0.0
        %609 = vmatmul.mubr.f32.gmra.mrb[0].mxu0 %v534
        %v610 = vpop.f32.mrb[0].mxu0
        %v611 = vadd.f32 %v527, %v610
        %v612 = vpop.f32.mrb[0].mxu0
        %613 = vdwg.mxu0
        %614 = vadd.xlane.f32.xlu0 %v606
        %v615 = vpop.xlane.xlu0 %614
        %616 = vadd.xlane.f32.xlu0 %v611
        %v617 = vpop.xlane.xlu0 %616
        %v618 = vrcp.pop 128.0
        %v619 = vmul.f32 %v615, %v618
        %v620 = vmul.f32 %v617, %v618
        %v621 = vld [vmem:[%s7] sm:$0xff]
        %v622 = vld [vmem:[%s7 + $0x8] sm:$0xff]
        %v623 = vmul.f32 %v621, %v619
        %v624 = vmul.f32 %v622, %v620
        %vm625 = vcmask 7168
        %v626 = vsel %vm625, %v623, 0.0
        %v627 = vsel %vm625, %v624, 0.0
        %v628 = vadd.f32 %v626, %v627
        %v629 = vrot.slane %v628, 4
        %v630 = vadd.f32 %v628, %v629
        %v631 = vrot.slane %v630, 2
        %v632 = vadd.f32 %v630, %v631
        %v633 = vrot.slane %v632, 1
        %v634 = vadd.f32 %v632, %v633
        %v635 = vmax.f32 %v634, 0.0
        %v636 = vld [vmem:[%s8] sm:$0xff]
        %v637 = vld [vmem:[%s8 + $0x8] sm:$0xff]
        %v638 = vmul.f32 %v636, %v635
        %v639 = vmul.f32 %v637, %v635
        %v640 = vadd.f32 %v638, 0.0
        %v641 = vadd.f32 %v639, 0.0
        %v642 = vxor.u32 %v640, 2147483648
        %v643 = vxor.u32 %v641, 2147483648
        %v644 = vmul.f32 %v642, 1.442695
        %v645 = vpow.pop %v644
        %v646 = vmul.f32 %v643, 1.442695
        %v647 = vpow.pop %v646
        %v648 = vadd.f32 %v645, 1.0
        %v649 = vadd.f32 %v647, 1.0
        %v650 = vrcp.pop %v648
        %v651 = vmul.f32 1.0, %v650
        %v652 = vrcp.pop %v649
        %v653 = vmul.f32 1.0, %v652
        %655 = vset.pattern.permute.xlu0 0
        %656 = vperm.xlu0 %655, %v651
        %v657 = vpop.permute.xlu0 %656
        %660 = vset.pattern.permute.xlu0 0
        %661 = vperm.xlu0 %660, %v653
        %v662 = vpop.permute.xlu0 %661
        %v664 = vmul.f32 %v606, %v657
        %v665 = vmul.f32 %v611, %v662
        %v666 = vadd.f32 %v664, %v331
        %v667 = vadd.f32 %v665, %v332
        %v668 = vmax.f32 %v666, 0.0
        %v669 = vmax.f32 %v667, 0.0
        %670 = vst [vmem:[%s325] sm:$0xff] %v668
        %671 = vst [vmem:[%s325 + $0x8] sm:$0xff] %v669
        %s672 = sand.u32 %s225, 1
        %s673 = scalar_lea.sflag [#allocation3], %s672
        %s674 = sand.u32 %s225, 1
        %s675 = smul.addr %s674, 16
        %s676 = scalar_lea.vmem [#allocation2], %s675
        // Predicated region
        $region57: #{tpu_custom_call.1} parent=55 // pred_check
          %p677 = pneg %p235
        $region58: #{tpu_custom_call.1} parent=55 // pred_check_branch
          %679 = sbr.rel (%p677) target = $region60
        $region59: #{tpu_custom_call.1} parent=55 // pred_region
          %s681 = ssub.s32 256, 256
          %682 = vsyncadd %s673, %s681
          %s683 = smul.addr %s23, 2
          %s684 = smul.addr %s683, 128
          %s685 = scalar_lea.hbm %s9, %s684
          %s686 = sshll.u32 %s676, 4
          %s687 = int_to_ptr.vmem [resolvable:$true] %s686
          %692 = dma.vmem_to_hbm [thread:$0]  %s687, 256, %s685, %s673, 128, 128, 8
        $region60: #{tpu_custom_call.1} parent=55 // pred_fallthru
          _
      $region56: #{tpu_custom_call.1} parent=5 // pred_fallthru
        _
      %p693 = scmp.le.s32.totalorder 2, %s18
      // Predicated region
      $region61: #{tpu_custom_call.1} parent=5 // pred_check
        %p694 = pneg %p693
      $region62: #{tpu_custom_call.1} parent=5 // pred_check_branch
        %696 = sbr.rel (%p694) target = $region64
      $region63: #{tpu_custom_call.1} parent=5 // pred_region
        %s697 = ssub.s32 %s18, 2
        // Predicated region
        $region65: #{tpu_custom_call.1} parent=63 // pred_check
          %p698 = pneg %p241
        $region66: #{tpu_custom_call.1} parent=63 // pred_check_branch
          %700 = sbr.rel (%p698) target = $region68
        $region67: #{tpu_custom_call.1} parent=63 // pred_region
          %s701 = sand.u32 %s226, 1
          %s702 = scalar_lea.sflag [#allocation3], %s701
          %s703 = sand.u32 %s226, 1
          %s704 = smul.addr %s703, 16
          %s705 = scalar_lea.vmem [#allocation2], %s704
          %706 = dma.done %s702, 256
        $region68: #{tpu_custom_call.1} parent=63 // pred_fallthru
          _
      $region64: #{tpu_custom_call.1} parent=5 // pred_fallthru
        _
    $region6: #{tpu_custom_call.1} parent=1 // loop_footer
      %s22 = sadd.s32 1, %s18
    $region7: #{tpu_custom_call.1} parent=1 // loop_footer_branch
      %17 = sbr.rel target = $region3
    $region8: #{tpu_custom_call.1} parent=1 // loop_exit
      _
    %707 = vsyncpa [#allocation3], 1
    %s708 = scalar_lea.sflag [#allocation3], 1
    %709 = vsyncpa %s708, 1

</llo_original>
